<compile_context>
chip_gen: v7x
topology: tpu7x:2x2x1
jax: 0.10.0
libtpu: 0.0.40
codegen_flags: <defaults>
</compile_context>

<pallas_src>
import jax
import jax.numpy as jnp
from jax.experimental import pallas as pl
from jax.experimental.pallas import tpu as pltpu


def _mlp_kernel(x_ref, w1_ref, b1_ref, w2_ref, b2_ref, w3_ref, b3_ref, o_ref):
    # linear1 + relu1 (K=8 MXU pass; kept on MXU -- see header comment)
    h1 = jnp.dot(x_ref[...], w1_ref[...], preferred_element_type=jnp.float32)
    h1 = jnp.maximum(h1 + b1_ref[...], 0.0)
    # linear2 + relu2
    h2 = jnp.dot(h1.astype(jnp.bfloat16), w2_ref[...],
                 preferred_element_type=jnp.float32)
    h2 = jnp.maximum(h2 + b2_ref[...], 0.0)
    # linear3 (no activation), lane-padded to 128 outputs
    out = jnp.dot(h2.astype(jnp.bfloat16), w3_ref[...],
                  preferred_element_type=jnp.float32) + b3_ref[...]
    # bf16 store halves the dominant HBM write stream; wrapper upcasts.
    o_ref[...] = out.astype(o_ref.dtype)


def _round_up(x, m):
    return ((x + m - 1) // m) * m


def lunar_lander_forward(x, params):
    """Run the full 3-layer MLP inside a single Pallas kernel.

    x: (B, 8) float32
    params: dict with w1 (8,512), b1 (1,512), w2 (512,256), b2 (1,256),
            w3 (256,4), b3 (1,4); weights bf16, biases f32.
    returns: (B, 4) float32 Q-values (bf16-rounded, see precision contract).
    """
    B = x.shape[0]
    w1, b1 = params["w1"], params["b1"]
    w2, b2 = params["w2"], params["b2"]
    w3, b3 = params["w3"], params["b3"]

    # Lane-dense final layer: pad 4 output units to 128 lanes with zeros so the
    # final store is an unmasked vst instead of a 4-wide vst.msk.
    OUT_PAD = 128
    w3p = jnp.pad(w3, ((0, 0), (0, OUT_PAD - w3.shape[1])))
    b3p = jnp.pad(b3, ((0, 0), (0, OUT_PAD - b3.shape[1])))

    # Batch tiling:
    #  - round the batch to a multiple of 16 (bf16 (16,128) sublane packing),
    #  - tiny batches (<=32 rows) run as a single grid step,
    #  - otherwise pick TB ~= half the padded batch (capped at 1024, multiple
    #    of 16) so there are always >=2 grid steps for v7x megacore sharding
    #    and large bursts for the DMA pipeline.
    TB_CAP = 1024
    B16 = _round_up(B, 16)
    if B16 <= 32:
        TB = B16
    else:
        TB = min(TB_CAP, _round_up(pl.cdiv(B16, 2), 16))
    B_pad = _round_up(B16, TB)

    x_b = x.astype(jnp.bfloat16)
    if B_pad != B:
        x_b = jnp.pad(x_b, ((0, B_pad - B), (0, 0)))

    grid = (B_pad // TB,)

    in_specs = [
        pl.BlockSpec((TB, 8), lambda i: (i, 0)),          # x tile (pipelined)
        pl.BlockSpec((8, 512), lambda i: (0, 0)),         # w1 (VMEM-resident)
        pl.BlockSpec((1, 512), lambda i: (0, 0)),         # b1
        pl.BlockSpec((512, 256), lambda i: (0, 0)),       # w2
        pl.BlockSpec((1, 256), lambda i: (0, 0)),         # b2
        pl.BlockSpec((256, OUT_PAD), lambda i: (0, 0)),   # w3 (lane-padded)
        pl.BlockSpec((1, OUT_PAD), lambda i: (0, 0)),     # b3 (lane-padded)
    ]
    out_specs = pl.BlockSpec((TB, OUT_PAD), lambda i: (i, 0))

    flops = 2 * B_pad * (8 * 512 + 512 * 256 + 256 * 4)
    bytes_accessed = (
        B_pad * 8 * 2                                  # x (bf16)
        + (8 * 512 + 512 * 256 + 256 * OUT_PAD) * 2    # weights (bf16)
        + (512 + 256 + OUT_PAD) * 4                    # biases (f32)
        + B_pad * OUT_PAD * 2                          # output (bf16)
    )

    out_padded = pl.pallas_call(
        _mlp_kernel,
        out_shape=jax.ShapeDtypeStruct((B_pad, OUT_PAD), jnp.bfloat16),
        grid=grid,
        in_specs=in_specs,
        out_specs=out_specs,
        compiler_params=pltpu.CompilerParams(
            dimension_semantics=("parallel",),
            vmem_limit_bytes=32 * 1024 * 1024),
        cost_estimate=pl.CostEstimate(
            flops=flops, transcendentals=0, bytes_accessed=bytes_accessed),
    )(x_b, w1, b1, w2, b2, w3p, b3p)

    return out_padded[:B, :4].astype(jnp.float32)


def init_params(key):
    """Deterministic init mirroring nn.Linear default (uniform(+-1/sqrt(fan_in))).

    Weights are stored as (in, out) == torch weight (out, in) transposed, cast
    to bf16 (MXU-native); biases stay f32.
    """
    dims = [(8, 512), (512, 256), (256, 4)]
    params = {}
    for i, (fan_in, fan_out) in enumerate(dims, start=1):
        key, kw, kb = jax.random.split(key, 3)
        bound = 1.0 / jnp.sqrt(jnp.float32(fan_in))
        params[f"w{i}"] = jax.random.uniform(
            kw, (fan_in, fan_out), jnp.float32, -bound, bound
        ).astype(jnp.bfloat16)
        params[f"b{i}"] = jax.random.uniform(
            kb, (1, fan_out), jnp.float32, -bound, bound)
    return params


def reference_forward(x, params):
    """Pure-JAX reference using the same bf16-weight / f32-accumulate math."""
    xb = x.astype(jnp.bfloat16)
    h1 = jnp.maximum(
        jnp.dot(xb, params["w1"], preferred_element_type=jnp.float32)
        + params["b1"], 0.0)
    h2 = jnp.maximum(
        jnp.dot(h1.astype(jnp.bfloat16), params["w2"],
                preferred_element_type=jnp.float32) + params["b2"], 0.0)
    return (jnp.dot(h2.astype(jnp.bfloat16), params["w3"],
                    preferred_element_type=jnp.float32) + params["b3"])


if __name__ == "__main__":
    key = jax.random.PRNGKey(0)
    key, kx = jax.random.split(key)

    batch = 8
    x = jax.random.normal(kx, (batch, 8), jnp.float32)  # LunarLander state dim = 8
    params = init_params(key)

    out = lunar_lander_forward(x, params)
    out = jax.block_until_ready(out)

    ref = reference_forward(x, params)
    assert out.shape == (batch, 4), out.shape
    # Tolerance covers the bf16 output store (~1e-3 abs at these magnitudes)
    # on top of shared bf16-weight / f32-accumulate math.
    assert jnp.allclose(out, ref, atol=1e-2, rtol=1e-2), "mismatch vs JAX reference"

    print("KERNEL_OK")
</pallas_src>

<mosaic_0001>
module attributes {stable_mosaic.version = 11 : i64} {
  func.func @_mlp_kernel(%arg0: i32, %arg1: memref<16x8xbf16, #tpu.memory_space<vmem>>, %arg2: memref<8x512xbf16, #tpu.memory_space<vmem>>, %arg3: memref<1x512xf32, #tpu.memory_space<vmem>>, %arg4: memref<512x256xbf16, #tpu.memory_space<vmem>>, %arg5: memref<1x256xf32, #tpu.memory_space<vmem>>, %arg6: memref<256x128xbf16, #tpu.memory_space<vmem>>, %arg7: memref<1x128xf32, #tpu.memory_space<vmem>>, %arg8: memref<16x128xbf16, #tpu.memory_space<vmem>>) attributes {dimension_semantics = [#tpu.dimension_semantics<parallel>], iteration_bounds = array<i64: 1>, scalar_prefetch = 0 : i64, scratch_operands = 0 : i64, tpu.core_type = #tpu.core_type<tc>, window_params = [{transform_indices = @transform_0, window_bounds = array<i64: 16, 8>}, {pipeline_mode = #tpu.pipeline_mode<synchronous>, transform_indices = @transform_1, window_bounds = array<i64: 8, 512>}, {pipeline_mode = #tpu.pipeline_mode<synchronous>, transform_indices = @transform_2, window_bounds = array<i64: 1, 512>}, {pipeline_mode = #tpu.pipeline_mode<synchronous>, transform_indices = @transform_3, window_bounds = array<i64: 512, 256>}, {pipeline_mode = #tpu.pipeline_mode<synchronous>, transform_indices = @transform_4, window_bounds = array<i64: 1, 256>}, {pipeline_mode = #tpu.pipeline_mode<synchronous>, transform_indices = @transform_5, window_bounds = array<i64: 256, 128>}, {pipeline_mode = #tpu.pipeline_mode<synchronous>, transform_indices = @transform_6, window_bounds = array<i64: 1, 128>}, {transform_indices = @transform_7, window_bounds = array<i64: 16, 128>}]} {
    %c0 = arith.constant 0 : index
    %c0_0 = arith.constant 0 : index
    %0 = vector.load %arg1[%c0, %c0_0] : memref<16x8xbf16, #tpu.memory_space<vmem>>, vector<16x8xbf16>
    %c0_1 = arith.constant 0 : index
    %c0_2 = arith.constant 0 : index
    %1 = vector.load %arg2[%c0_1, %c0_2] : memref<8x512xbf16, #tpu.memory_space<vmem>>, vector<8x512xbf16>
    %cst = arith.constant dense<0.000000e+00> : vector<16x512xf32>
    %2 = tpu.matmul %0, %1, %cst {dimension_numbers = #tpu.dot_dimension_numbers<[1], [0], [0], [1], [0, 0, 1, 1], [], []>} : vector<16x8xbf16>, vector<8x512xbf16>, vector<16x512xf32> -> vector<16x512xf32>
    %c0_3 = arith.constant 0 : index
    %c0_4 = arith.constant 0 : index
    %3 = vector.load %arg3[%c0_3, %c0_4] : memref<1x512xf32, #tpu.memory_space<vmem>>, vector<1x512xf32>
    %4 = vector.broadcast %3 : vector<1x512xf32> to vector<16x512xf32>
    %5 = arith.addf %2, %4 : vector<16x512xf32>
    %cst_5 = arith.constant 0.000000e+00 : f32
    %6 = vector.broadcast %cst_5 : f32 to vector<16x512xf32>
    %7 = arith.maximumf %5, %6 : vector<16x512xf32>
    %8 = arith.truncf %7 : vector<16x512xf32> to vector<16x512xbf16>
    %c0_6 = arith.constant 0 : index
    %c0_7 = arith.constant 0 : index
    %9 = vector.load %arg4[%c0_6, %c0_7] : memref<512x256xbf16, #tpu.memory_space<vmem>>, vector<512x256xbf16>
    %cst_8 = arith.constant dense<0.000000e+00> : vector<16x256xf32>
    %10 = tpu.matmul %8, %9, %cst_8 {dimension_numbers = #tpu.dot_dimension_numbers<[1], [0], [0], [1], [0, 0, 1, 1], [], []>} : vector<16x512xbf16>, vector<512x256xbf16>, vector<16x256xf32> -> vector<16x256xf32>
    %c0_9 = arith.constant 0 : index
    %c0_10 = arith.constant 0 : index
    %11 = vector.load %arg5[%c0_9, %c0_10] : memref<1x256xf32, #tpu.memory_space<vmem>>, vector<1x256xf32>
    %12 = vector.broadcast %11 : vector<1x256xf32> to vector<16x256xf32>
    %13 = arith.addf %10, %12 : vector<16x256xf32>
    %cst_11 = arith.constant 0.000000e+00 : f32
    %14 = vector.broadcast %cst_11 : f32 to vector<16x256xf32>
    %15 = arith.maximumf %13, %14 : vector<16x256xf32>
    %16 = arith.truncf %15 : vector<16x256xf32> to vector<16x256xbf16>
    %c0_12 = arith.constant 0 : index
    %c0_13 = arith.constant 0 : index
    %17 = vector.load %arg6[%c0_12, %c0_13] : memref<256x128xbf16, #tpu.memory_space<vmem>>, vector<256x128xbf16>
    %cst_14 = arith.constant dense<0.000000e+00> : vector<16x128xf32>
    %18 = tpu.matmul %16, %17, %cst_14 {dimension_numbers = #tpu.dot_dimension_numbers<[1], [0], [0], [1], [0, 0, 1, 1], [], []>} : vector<16x256xbf16>, vector<256x128xbf16>, vector<16x128xf32> -> vector<16x128xf32>
    %c0_15 = arith.constant 0 : index
    %c0_16 = arith.constant 0 : index
    %19 = vector.load %arg7[%c0_15, %c0_16] : memref<1x128xf32, #tpu.memory_space<vmem>>, vector<1x128xf32>
    %20 = vector.broadcast %19 : vector<1x128xf32> to vector<16x128xf32>
    %21 = arith.addf %18, %20 : vector<16x128xf32>
    %22 = arith.truncf %21 : vector<16x128xf32> to vector<16x128xbf16>
    %c0_17 = arith.constant 0 : index
    %c0_18 = arith.constant 0 : index
    %23 = vector.load %arg8[%c0_17, %c0_18] : memref<16x128xbf16, #tpu.memory_space<vmem>>, vector<16x128xbf16>
    tpu.vector_store %arg8[%c0_17, %c0_18], %22 {strides = array<i32>} : memref<16x128xbf16, #tpu.memory_space<vmem>>, vector<16x128xbf16>,
    return
  }
  func.func @transform_0(%arg0: i32) -> (i32, i32) {
    %c0_i32 = arith.constant 0 : i32
    %c0_i32_0 = arith.constant 0 : i32
    return %arg0, %c0_i32 : i32, i32
  }
  func.func @transform_1(%arg0: i32) -> (i32, i32) {
    %c0_i32 = arith.constant 0 : i32
    %c0_i32_0 = arith.constant 0 : i32
    %c0_i32_1 = arith.constant 0 : i32
    return %c0_i32, %c0_i32_0 : i32, i32
  }
  func.func @transform_2(%arg0: i32) -> (i32, i32) {
    %c0_i32 = arith.constant 0 : i32
    %c0_i32_0 = arith.constant 0 : i32
    %c0_i32_1 = arith.constant 0 : i32
    return %c0_i32, %c0_i32_0 : i32, i32
  }
  func.func @transform_3(%arg0: i32) -> (i32, i32) {
    %c0_i32 = arith.constant 0 : i32
    %c0_i32_0 = arith.constant 0 : i32
    %c0_i32_1 = arith.constant 0 : i32
    return %c0_i32, %c0_i32_0 : i32, i32
  }
  func.func @transform_4(%arg0: i32) -> (i32, i32) {
    %c0_i32 = arith.constant 0 : i32
    %c0_i32_0 = arith.constant 0 : i32
    %c0_i32_1 = arith.constant 0 : i32
    return %c0_i32, %c0_i32_0 : i32, i32
  }
  func.func @transform_5(%arg0: i32) -> (i32, i32) {
    %c0_i32 = arith.constant 0 : i32
    %c0_i32_0 = arith.constant 0 : i32
    %c0_i32_1 = arith.constant 0 : i32
    return %c0_i32, %c0_i32_0 : i32, i32
  }
  func.func @transform_6(%arg0: i32) -> (i32, i32) {
    %c0_i32 = arith.constant 0 : i32
    %c0_i32_0 = arith.constant 0 : i32
    %c0_i32_1 = arith.constant 0 : i32
    return %c0_i32, %c0_i32_0 : i32, i32
  }
  func.func @transform_7(%arg0: i32) -> (i32, i32) {
    %c0_i32 = arith.constant 0 : i32
    %c0_i32_0 = arith.constant 0 : i32
    return %arg0, %c0_i32 : i32, i32
  }
}

</mosaic_0001>

<llo_original>
// kernel: tpu_custom_call.1
$region0: #{tpu_custom_call.1}
  #allocation0 [shape = 'u32[]', space=smem, size = 0x4, offset = 0x4, fixed_abs, tag = 'smem constant byte address 0x4 - core index']
  #allocation1 [shape = 'u32[144,128]{1,0:T(1,128)}', space=vmem, size = 0x12000, scoped, tag = 'internal scratch']
  %s0 = inlined_call_operand.vmem [shape: bf16[16,8], index: 0, kind: input, shape index: {}]
  %s1 = inlined_call_operand.hbm [shape: bf16[8,512], index: 1, kind: input, shape index: {}]
  %s2 = inlined_call_operand.vmem [shape: f32[1,512], index: 2, kind: input, shape index: {}]
  %s3 = inlined_call_operand.hbm [shape: bf16[512,256], index: 3, kind: input, shape index: {}]
  %s4 = inlined_call_operand.vmem [shape: f32[1,256], index: 4, kind: input, shape index: {}]
  %s5 = inlined_call_operand.hbm [shape: bf16[256,128], index: 5, kind: input, shape index: {}]
  %s6 = inlined_call_operand.vmem [shape: f32[1,128], index: 6, kind: input, shape index: {}]
  %s7 = inlined_call_operand.hbm [shape: bf16[16,128], index: 7, kind: output, shape index: {}]
  %s8 = sld [smem:[#allocation0]]
  $region50: #{tpu_custom_call.1} parent=0
    _
  %s10 = ssub.s32 1, %s8
  %s11 = scalar_select 0, %s10, %s8
  $region1: #{tpu_custom_call.1} parent=0
    #allocation2 [shape = 'u8[8192]{0}', space=vmem, size = 0x2000, scoped, tag = 'input window, operand 1, single buffered']
    #allocation3 [shape = 's32[1]{0}', space=sflag, size = 0x4, scoped, tag = 'scoped memory for tpu_custom_call.1']
    #allocation4 [shape = 's32[1]{0}', space=sflag, size = 0x4, scoped, tag = 'scoped memory for tpu_custom_call.1']
    #allocation5 [shape = 'u8[262144]{0}', space=vmem, size = 0x40000, scoped, tag = 'input window, operand 3, single buffered']
    #allocation6 [shape = 's32[1]{0}', space=sflag, size = 0x4, scoped, tag = 'scoped memory for tpu_custom_call.1']
    #allocation7 [shape = 'u8[65536]{0}', space=vmem, size = 0x10000, scoped, tag = 'input window, operand 5, single buffered']
    #allocation8 [shape = 'u8[4096]{0}', space=vmem, size = 0x1000, scoped, tag = 'output window, operand 0, single buffered']
    %12 = vsyncpa [#allocation3], 0
    %13 = vsyncpa [#allocation6], 0
    %14 = vsyncpa [#allocation4], 0
    // Predicated region
    $region2: #{tpu_custom_call.1} parent=1 // pred_check
      _
    $region3: #{tpu_custom_call.1} parent=1 // pred_check_branch
      %16 = sbr.rel (0) target = $region5
    $region4: #{tpu_custom_call.1} parent=1 // pred_region
      _
    $region5: #{tpu_custom_call.1} parent=1 // pred_fallthru
      _
    // Predicated region
    $region6: #{tpu_custom_call.1} parent=1 // pred_check
      _
    $region7: #{tpu_custom_call.1} parent=1 // pred_check_branch
      %18 = sbr.rel (0) target = $region9
    $region8: #{tpu_custom_call.1} parent=1 // pred_region
      %s20 = ssub.s32 256, 256
      %21 = vsyncadd [#allocation3], %s20
      %s23 = sshll.u32 [#allocation2], 4
      %s24 = int_to_ptr.vmem [resolvable:$true] %s23
      %26 = dma.hbm_to_vmem [thread:$0]  %s1, 256, %s24, [#allocation3]
    $region9: #{tpu_custom_call.1} parent=1 // pred_fallthru
      _
    // Predicated region
    $region10: #{tpu_custom_call.1} parent=1 // pred_check
      _
    $region11: #{tpu_custom_call.1} parent=1 // pred_check_branch
      %28 = sbr.rel (0) target = $region13
    $region12: #{tpu_custom_call.1} parent=1 // pred_region
      _
    $region13: #{tpu_custom_call.1} parent=1 // pred_fallthru
      _
    // Predicated region
    $region14: #{tpu_custom_call.1} parent=1 // pred_check
      _
    $region15: #{tpu_custom_call.1} parent=1 // pred_check_branch
      %30 = sbr.rel (0) target = $region17
    $region16: #{tpu_custom_call.1} parent=1 // pred_region
      %s32 = ssub.s32 8192, 8192
      %33 = vsyncadd [#allocation6], %s32
      %s34 = sshll.u32 [#allocation5], 4
      %s35 = int_to_ptr.vmem [resolvable:$true] %s34
      %40 = dma.hbm_to_vmem [thread:$0]  %s3, 8192, %s35, [#allocation6], 128, 128, 8
    $region17: #{tpu_custom_call.1} parent=1 // pred_fallthru
      _
    // Predicated region
    $region18: #{tpu_custom_call.1} parent=1 // pred_check
      _
    $region19: #{tpu_custom_call.1} parent=1 // pred_check_branch
      %42 = sbr.rel (0) target = $region21
    $region20: #{tpu_custom_call.1} parent=1 // pred_region
      _
    $region21: #{tpu_custom_call.1} parent=1 // pred_fallthru
      _
    // Predicated region
    $region22: #{tpu_custom_call.1} parent=1 // pred_check
      _
    $region23: #{tpu_custom_call.1} parent=1 // pred_check_branch
      %44 = sbr.rel (0) target = $region25
    $region24: #{tpu_custom_call.1} parent=1 // pred_region
      %s46 = ssub.s32 2048, 2048
      %47 = vsyncadd [#allocation6], %s46
      %s48 = sshll.u32 [#allocation7], 4
      %s49 = int_to_ptr.vmem [resolvable:$true] %s48
      %54 = dma.hbm_to_vmem [thread:$0]  %s5, 2048, %s49, [#allocation6], 64, 64, 4
    $region25: #{tpu_custom_call.1} parent=1 // pred_fallthru
      _
    // Predicated region
    $region26: #{tpu_custom_call.1} parent=1 // pred_check
      _
    $region27: #{tpu_custom_call.1} parent=1 // pred_check_branch
      %56 = sbr.rel (0) target = $region29
    $region28: #{tpu_custom_call.1} parent=1 // pred_region
      _
    $region29: #{tpu_custom_call.1} parent=1 // pred_fallthru
      _
    // Predicated region
    $region30: #{tpu_custom_call.1} parent=1 // pred_check
      _
    $region31: #{tpu_custom_call.1} parent=1 // pred_check_branch
      %58 = sbr.rel (0) target = $region33
    $region32: #{tpu_custom_call.1} parent=1 // pred_region
      %59 = dma.done [#allocation3], 256
    $region33: #{tpu_custom_call.1} parent=1 // pred_fallthru
      _
    // Predicated region
    $region34: #{tpu_custom_call.1} parent=1 // pred_check
      _
    $region35: #{tpu_custom_call.1} parent=1 // pred_check_branch
      %61 = sbr.rel (0) target = $region37
    $region36: #{tpu_custom_call.1} parent=1 // pred_region
      %62 = dma.done [#allocation6], 8192
    $region37: #{tpu_custom_call.1} parent=1 // pred_fallthru
      _
    // Predicated region
    $region38: #{tpu_custom_call.1} parent=1 // pred_check
      _
    $region39: #{tpu_custom_call.1} parent=1 // pred_check_branch
      %64 = sbr.rel (0) target = $region41
    $region40: #{tpu_custom_call.1} parent=1 // pred_region
      %65 = dma.done [#allocation6], 2048
    $region41: #{tpu_custom_call.1} parent=1 // pred_fallthru
      _
    %v67 = vld [vmem:[%s0] sm:$0xf]
    %v68 = vld [vmem:[%s0 + $0x4] sm:$0xf]
    %v69 = vld [vmem:[#allocation2] sm:$0xff]
    %v70 = vld [vmem:[#allocation2 + $0x8] sm:$0xff]
    %v71 = vld [vmem:[%s2] sm:$0xf]
    %v73 = vlaneseq
    %v74 = vshrl.u32 %v73, 7
    %v75 = vsub.s32 0, %v74
    %v76 = vrot.slane %v71, %v75
    %v77 = vlaneseq
    %v78 = vshrl.u32 %v77, 7
    %v79 = vsub.s32 1, %v78
    %v80 = vrot.slane %v71, %v79
    %v81 = vlaneseq
    %v82 = vshrl.u32 %v81, 7
    %v83 = vsub.s32 2, %v82
    %v84 = vrot.slane %v71, %v83
    %v85 = vlaneseq
    %v86 = vshrl.u32 %v85, 7
    %v87 = vsub.s32 3, %v86
    %v88 = vrot.slane %v71, %v87
    %v95 = vunpack.c.l.b16 %v67
    %v96 = vunpack.c.l.b16 %v68
    %v97 = vpack.c.b16 %v96, %v95
    %v100 = vunpack.c.l.b16 %v69
    %v101 = vunpack.c.h.b16 %v69
    %v102 = vunpack.c.l.b16 %v70
    %v103 = vunpack.c.h.b16 %v70
    %v104 = vpack.c.b16 %v100, %v100
    %v105 = vpack.c.b16 %v101, %v101
    %v106 = vpack.c.b16 %v102, %v102
    %v107 = vpack.c.b16 %v103, %v103
    %vm108 = vcmask 64512
    %v110 = vsel %vm108, %v97, 0
    %vm112 = vcmask 1043456
    %v114 = vsel %vm112, %v104, 0
    %v117 = vsel %vm112, %v105, 0
    %v120 = vsel %vm112, %v106, 0
    %v123 = vsel %vm112, %v107, 0
    %125 = vmatprep.subr.bf16.mxu0 %v117
    %126 = vmatpush1.bf16.msra.mxu0 %v114
    %127 = vmatprep.subr.bf16.mxu0 0
    %128 = vmatpush1.bf16.msra.mxu0 0
    %129 = vmatprep.subr.bf16.mxu0 0
    %130 = vmatpush1.bf16.msra.mxu0 0
    %131 = vmatprep.subr.bf16.mxu0 0
    %132 = vmatpush1.bf16.msra.mxu0 0
    %133 = vmatprep.subr.bf16.mxu0 0
    %134 = vmatpush1.bf16.msra.mxu0 0
    %135 = vmatprep.subr.bf16.mxu0 0
    %136 = vmatpush1.bf16.msra.mxu0 0
    %137 = vmatprep.subr.bf16.mxu0 0
    %138 = vmatpush1.bf16.msra.mxu0 0
    %139 = vmatprep.subr.bf16.mxu0 0
    %140 = vmatpush1.bf16.msra.mxu0 0
    %141 = vmatprep.subr.bf16.mxu0 0
    %142 = vmatpush1.bf16.msra.mxu0 0
    %143 = vmatprep.subr.bf16.mxu0 0
    %144 = vmatpush1.bf16.msra.mxu0 0
    %145 = vmatprep.subr.bf16.mxu0 0
    %146 = vmatpush1.bf16.msra.mxu0 0
    %147 = vmatprep.subr.bf16.mxu0 0
    %148 = vmatpush1.bf16.msra.mxu0 0
    %149 = vmatprep.subr.bf16.mxu0 0
    %150 = vmatpush1.bf16.msra.mxu0 0
    %151 = vmatprep.subr.bf16.mxu0 0
    %152 = vmatpush1.bf16.msra.mxu0 0
    %153 = vmatprep.subr.bf16.mxu0 0
    %154 = vmatpush1.bf16.msra.mxu0 0
    %155 = vmatprep.subr.bf16.mxu0 0
    %156 = vmatpush1.bf16.msra.mxu0 0
    %157 = vmatprep.mubr.bf16.mxu0 0
    %158 = vmatmul.mubr.bf16.gmra.mrb[0].mxu0 %v110
    %v159 = vpop.f32.mrb[0].mxu0
    %v160 = vadd.f32 %v76, %v159
    %v161 = vpop.f32.mrb[0].mxu0
    %v162 = vadd.f32 %v80, %v161
    %v163 = vpop.f32.mrb[0].mxu0
    %v164 = vadd.f32 %v76, %v163
    %v165 = vpop.f32.mrb[0].mxu0
    %v166 = vadd.f32 %v80, %v165
    %167 = vdwg.mxu0
    %168 = vmatprep.subr.bf16.mxu0 %v123
    %169 = vmatpush1.bf16.msra.mxu0 %v120
    %170 = vmatprep.subr.bf16.mxu0 0
    %171 = vmatpush1.bf16.msra.mxu0 0
    %172 = vmatprep.subr.bf16.mxu0 0
    %173 = vmatpush1.bf16.msra.mxu0 0
    %174 = vmatprep.subr.bf16.mxu0 0
    %175 = vmatpush1.bf16.msra.mxu0 0
    %176 = vmatprep.subr.bf16.mxu0 0
    %177 = vmatpush1.bf16.msra.mxu0 0
    %178 = vmatprep.subr.bf16.mxu0 0
    %179 = vmatpush1.bf16.msra.mxu0 0
    %180 = vmatprep.subr.bf16.mxu0 0
    %181 = vmatpush1.bf16.msra.mxu0 0
    %182 = vmatprep.subr.bf16.mxu0 0
    %183 = vmatpush1.bf16.msra.mxu0 0
    %184 = vmatprep.subr.bf16.mxu0 0
    %185 = vmatpush1.bf16.msra.mxu0 0
    %186 = vmatprep.subr.bf16.mxu0 0
    %187 = vmatpush1.bf16.msra.mxu0 0
    %188 = vmatprep.subr.bf16.mxu0 0
    %189 = vmatpush1.bf16.msra.mxu0 0
    %190 = vmatprep.subr.bf16.mxu0 0
    %191 = vmatpush1.bf16.msra.mxu0 0
    %192 = vmatprep.subr.bf16.mxu0 0
    %193 = vmatpush1.bf16.msra.mxu0 0
    %194 = vmatprep.subr.bf16.mxu0 0
    %195 = vmatpush1.bf16.msra.mxu0 0
    %196 = vmatprep.subr.bf16.mxu0 0
    %197 = vmatpush1.bf16.msra.mxu0 0
    %198 = vmatprep.subr.bf16.mxu0 0
    %199 = vmatpush1.bf16.msra.mxu0 0
    %200 = vmatprep.mubr.bf16.mxu0 0
    %201 = vmatmul.mubr.bf16.gmra.mrb[0].mxu0 %v110
    %v202 = vpop.f32.mrb[0].mxu0
    %v203 = vadd.f32 %v84, %v202
    %v204 = vpop.f32.mrb[0].mxu0
    %v205 = vadd.f32 %v88, %v204
    %v206 = vpop.f32.mrb[0].mxu0
    %v207 = vadd.f32 %v84, %v206
    %v208 = vpop.f32.mrb[0].mxu0
    %v209 = vadd.f32 %v88, %v208
    %210 = vdwg.mxu0
    %v211 = vmax.f32 %v160, 0.0
    %v212 = vmax.f32 %v162, 0.0
    %v213 = vmax.f32 %v203, 0.0
    %v214 = vmax.f32 %v205, 0.0
    %v215 = vmax.f32 %v164, 0.0
    %v216 = vmax.f32 %v166, 0.0
    %v217 = vmax.f32 %v207, 0.0
    %v218 = vmax.f32 %v209, 0.0
    %v219 = vpack.c.bf16 %v215, %v211
    %v220 = vpack.c.bf16 %v216, %v212
    %v221 = vpack.c.bf16 %v217, %v213
    %v222 = vpack.c.bf16 %v218, %v214
    %v223 = vld [vmem:[#allocation5] sm:$0xff]
    %v224 = vld [vmem:[#allocation5 + $0x8] sm:$0xff]
    %v225 = vld [vmem:[#allocation5 + $0x10] sm:$0xff]
    %v226 = vld [vmem:[#allocation5 + $0x18] sm:$0xff]
    %v227 = vld [vmem:[#allocation5 + $0x20] sm:$0xff]
    %v228 = vld [vmem:[#allocation5 + $0x28] sm:$0xff]
    %v229 = vld [vmem:[#allocation5 + $0x30] sm:$0xff]
    %v230 = vld [vmem:[#allocation5 + $0x38] sm:$0xff]
    %v231 = vld [vmem:[#allocation5 + $0x40] sm:$0xff]
    %v232 = vld [vmem:[#allocation5 + $0x48] sm:$0xff]
    %v233 = vld [vmem:[#allocation5 + $0x50] sm:$0xff]
    %v234 = vld [vmem:[#allocation5 + $0x58] sm:$0xff]
    %v235 = vld [vmem:[#allocation5 + $0x60] sm:$0xff]
    %v236 = vld [vmem:[#allocation5 + $0x68] sm:$0xff]
    %v237 = vld [vmem:[#allocation5 + $0x70] sm:$0xff]
    %v238 = vld [vmem:[#allocation5 + $0x78] sm:$0xff]
    %v239 = vld [vmem:[#allocation5 + $0x80] sm:$0xff]
    %v240 = vld [vmem:[#allocation5 + $0x88] sm:$0xff]
    %v241 = vld [vmem:[#allocation5 + $0x90] sm:$0xff]
    %v242 = vld [vmem:[#allocation5 + $0x98] sm:$0xff]
    %v243 = vld [vmem:[#allocation5 + $0xa0] sm:$0xff]
    %v244 = vld [vmem:[#allocation5 + $0xa8] sm:$0xff]
    %v245 = vld [vmem:[#allocation5 + $0xb0] sm:$0xff]
    %v246 = vld [vmem:[#allocation5 + $0xb8] sm:$0xff]
    %v247 = vld [vmem:[#allocation5 + $0xc0] sm:$0xff]
    %v248 = vld [vmem:[#allocation5 + $0xc8] sm:$0xff]
    %v249 = vld [vmem:[#allocation5 + $0xd0] sm:$0xff]
    %v250 = vld [vmem:[#allocation5 + $0xd8] sm:$0xff]
    %v251 = vld [vmem:[#allocation5 + $0xe0] sm:$0xff]
    %v252 = vld [vmem:[#allocation5 + $0xe8] sm:$0xff]
    %v253 = vld [vmem:[#allocation5 + $0xf0] sm:$0xff]
    %v254 = vld [vmem:[#allocation5 + $0xf8] sm:$0xff]
    %v255 = vld [vmem:[#allocation5 + $0x100] sm:$0xff]
    %v256 = vld [vmem:[#allocation5 + $0x108] sm:$0xff]
    %v257 = vld [vmem:[#allocation5 + $0x110] sm:$0xff]
    %v258 = vld [vmem:[#allocation5 + $0x118] sm:$0xff]
    %v259 = vld [vmem:[#allocation5 + $0x120] sm:$0xff]
    %v260 = vld [vmem:[#allocation5 + $0x128] sm:$0xff]
    %v261 = vld [vmem:[#allocation5 + $0x130] sm:$0xff]
    %v262 = vld [vmem:[#allocation5 + $0x138] sm:$0xff]
    %v263 = vld [vmem:[#allocation5 + $0x140] sm:$0xff]
    %v264 = vld [vmem:[#allocation5 + $0x148] sm:$0xff]
    %v265 = vld [vmem:[#allocation5 + $0x150] sm:$0xff]
    %v266 = vld [vmem:[#allocation5 + $0x158] sm:$0xff]
    %v267 = vld [vmem:[#allocation5 + $0x160] sm:$0xff]
    %v268 = vld [vmem:[#allocation5 + $0x168] sm:$0xff]
    %v269 = vld [vmem:[#allocation5 + $0x170] sm:$0xff]
    %v270 = vld [vmem:[#allocation5 + $0x178] sm:$0xff]
    %v271 = vld [vmem:[#allocation5 + $0x180] sm:$0xff]
    %v272 = vld [vmem:[#allocation5 + $0x188] sm:$0xff]
    %v273 = vld [vmem:[#allocation5 + $0x190] sm:$0xff]
    %v274 = vld [vmem:[#allocation5 + $0x198] sm:$0xff]
    %v275 = vld [vmem:[#allocation5 + $0x1a0] sm:$0xff]
    %v276 = vld [vmem:[#allocation5 + $0x1a8] sm:$0xff]
    %v277 = vld [vmem:[#allocation5 + $0x1b0] sm:$0xff]
    %v278 = vld [vmem:[#allocation5 + $0x1b8] sm:$0xff]
    %v279 = vld [vmem:[#allocation5 + $0x1c0] sm:$0xff]
    %v280 = vld [vmem:[#allocation5 + $0x1c8] sm:$0xff]
    %v281 = vld [vmem:[#allocation5 + $0x1d0] sm:$0xff]
    %v282 = vld [vmem:[#allocation5 + $0x1d8] sm:$0xff]
    %v283 = vld [vmem:[#allocation5 + $0x1e0] sm:$0xff]
    %v284 = vld [vmem:[#allocation5 + $0x1e8] sm:$0xff]
    %v285 = vld [vmem:[#allocation5 + $0x1f0] sm:$0xff]
    %v286 = vld [vmem:[#allocation5 + $0x1f8] sm:$0xff]
    %v287 = vld [vmem:[%s4] sm:$0x3]
    %v289 = vlaneseq
    %v290 = vshrl.u32 %v289, 7
    %v291 = vsub.s32 0, %v290
    %v292 = vrot.slane %v287, %v291
    %v293 = vlaneseq
    %v294 = vshrl.u32 %v293, 7
    %v295 = vsub.s32 1, %v294
    %v296 = vrot.slane %v287, %v295
    %v363 = vunpack.c.l.b16 %v223
    %v364 = vunpack.c.h.b16 %v223
    %v365 = vunpack.c.l.b16 %v224
    %v366 = vunpack.c.h.b16 %v224
    %v367 = vunpack.c.l.b16 %v225
    %v368 = vunpack.c.h.b16 %v225
    %v369 = vunpack.c.l.b16 %v226
    %v370 = vunpack.c.h.b16 %v226
    %v371 = vunpack.c.l.b16 %v227
    %v372 = vunpack.c.h.b16 %v227
    %v373 = vunpack.c.l.b16 %v228
    %v374 = vunpack.c.h.b16 %v228
    %v375 = vunpack.c.l.b16 %v229
    %v376 = vunpack.c.h.b16 %v229
    %v377 = vunpack.c.l.b16 %v230
    %v378 = vunpack.c.h.b16 %v230
    %v379 = vunpack.c.l.b16 %v231
    %v380 = vunpack.c.h.b16 %v231
    %v381 = vunpack.c.l.b16 %v232
    %v382 = vunpack.c.h.b16 %v232
    %v383 = vunpack.c.l.b16 %v233
    %v384 = vunpack.c.h.b16 %v233
    %v385 = vunpack.c.l.b16 %v234
    %v386 = vunpack.c.h.b16 %v234
    %v387 = vunpack.c.l.b16 %v235
    %v388 = vunpack.c.h.b16 %v235
    %v389 = vunpack.c.l.b16 %v236
    %v390 = vunpack.c.h.b16 %v236
    %v391 = vunpack.c.l.b16 %v237
    %v392 = vunpack.c.h.b16 %v237
    %v393 = vunpack.c.l.b16 %v238
    %v394 = vunpack.c.h.b16 %v238
    %v395 = vunpack.c.l.b16 %v239
    %v396 = vunpack.c.h.b16 %v239
    %v397 = vunpack.c.l.b16 %v240
    %v398 = vunpack.c.h.b16 %v240
    %v399 = vunpack.c.l.b16 %v241
    %v400 = vunpack.c.h.b16 %v241
    %v401 = vunpack.c.l.b16 %v242
    %v402 = vunpack.c.h.b16 %v242
    %v403 = vunpack.c.l.b16 %v243
    %v404 = vunpack.c.h.b16 %v243
    %v405 = vunpack.c.l.b16 %v244
    %v406 = vunpack.c.h.b16 %v244
    %v407 = vunpack.c.l.b16 %v245
    %v408 = vunpack.c.h.b16 %v245
    %v409 = vunpack.c.l.b16 %v246
    %v410 = vunpack.c.h.b16 %v246
    %v411 = vunpack.c.l.b16 %v247
    %v412 = vunpack.c.h.b16 %v247
    %v413 = vunpack.c.l.b16 %v248
    %v414 = vunpack.c.h.b16 %v248
    %v415 = vunpack.c.l.b16 %v249
    %v416 = vunpack.c.h.b16 %v249
    %v417 = vunpack.c.l.b16 %v250
    %v418 = vunpack.c.h.b16 %v250
    %v419 = vunpack.c.l.b16 %v251
    %v420 = vunpack.c.h.b16 %v251
    %v421 = vunpack.c.l.b16 %v252
    %v422 = vunpack.c.h.b16 %v252
    %v423 = vunpack.c.l.b16 %v253
    %v424 = vunpack.c.h.b16 %v253
    %v425 = vunpack.c.l.b16 %v254
    %v426 = vunpack.c.h.b16 %v254
    %v427 = vunpack.c.l.b16 %v255
    %v428 = vunpack.c.h.b16 %v255
    %v429 = vunpack.c.l.b16 %v256
    %v430 = vunpack.c.h.b16 %v256
    %v431 = vunpack.c.l.b16 %v257
    %v432 = vunpack.c.h.b16 %v257
    %v433 = vunpack.c.l.b16 %v258
    %v434 = vunpack.c.h.b16 %v258
    %v435 = vunpack.c.l.b16 %v259
    %v436 = vunpack.c.h.b16 %v259
    %v437 = vunpack.c.l.b16 %v260
    %v438 = vunpack.c.h.b16 %v260
    %v439 = vunpack.c.l.b16 %v261
    %v440 = vunpack.c.h.b16 %v261
    %v441 = vunpack.c.l.b16 %v262
    %v442 = vunpack.c.h.b16 %v262
    %v443 = vunpack.c.l.b16 %v263
    %v444 = vunpack.c.h.b16 %v263
    %v445 = vunpack.c.l.b16 %v264
    %v446 = vunpack.c.h.b16 %v264
    %v447 = vunpack.c.l.b16 %v265
    %v448 = vunpack.c.h.b16 %v265
    %v449 = vunpack.c.l.b16 %v266
    %v450 = vunpack.c.h.b16 %v266
    %v451 = vunpack.c.l.b16 %v267
    %v452 = vunpack.c.h.b16 %v267
    %v453 = vunpack.c.l.b16 %v268
    %v454 = vunpack.c.h.b16 %v268
    %v455 = vunpack.c.l.b16 %v269
    %v456 = vunpack.c.h.b16 %v269
    %v457 = vunpack.c.l.b16 %v270
    %v458 = vunpack.c.h.b16 %v270
    %v459 = vunpack.c.l.b16 %v271
    %v460 = vunpack.c.h.b16 %v271
    %v461 = vunpack.c.l.b16 %v272
    %v462 = vunpack.c.h.b16 %v272
    %v463 = vunpack.c.l.b16 %v273
    %v464 = vunpack.c.h.b16 %v273
    %v465 = vunpack.c.l.b16 %v274
    %v466 = vunpack.c.h.b16 %v274
    %v467 = vunpack.c.l.b16 %v275
    %v468 = vunpack.c.h.b16 %v275
    %v469 = vunpack.c.l.b16 %v276
    %v470 = vunpack.c.h.b16 %v276
    %v471 = vunpack.c.l.b16 %v277
    %v472 = vunpack.c.h.b16 %v277
    %v473 = vunpack.c.l.b16 %v278
    %v474 = vunpack.c.h.b16 %v278
    %v475 = vunpack.c.l.b16 %v279
    %v476 = vunpack.c.h.b16 %v279
    %v477 = vunpack.c.l.b16 %v280
    %v478 = vunpack.c.h.b16 %v280
    %v479 = vunpack.c.l.b16 %v281
    %v480 = vunpack.c.h.b16 %v281
    %v481 = vunpack.c.l.b16 %v282
    %v482 = vunpack.c.h.b16 %v282
    %v483 = vunpack.c.l.b16 %v283
    %v484 = vunpack.c.h.b16 %v283
    %v485 = vunpack.c.l.b16 %v284
    %v486 = vunpack.c.h.b16 %v284
    %v487 = vunpack.c.l.b16 %v285
    %v488 = vunpack.c.h.b16 %v285
    %v489 = vunpack.c.l.b16 %v286
    %v490 = vunpack.c.h.b16 %v286
    %v491 = vpack.c.b16 %v365, %v363
    %v492 = vpack.c.b16 %v366, %v364
    %v493 = vpack.c.b16 %v369, %v367
    %v494 = vpack.c.b16 %v370, %v368
    %v495 = vpack.c.b16 %v373, %v371
    %v496 = vpack.c.b16 %v374, %v372
    %v497 = vpack.c.b16 %v377, %v375
    %v498 = vpack.c.b16 %v378, %v376
    %v499 = vpack.c.b16 %v381, %v379
    %v500 = vpack.c.b16 %v382, %v380
    %v501 = vpack.c.b16 %v385, %v383
    %v502 = vpack.c.b16 %v386, %v384
    %v503 = vpack.c.b16 %v389, %v387
    %v504 = vpack.c.b16 %v390, %v388
    %v505 = vpack.c.b16 %v393, %v391
    %v506 = vpack.c.b16 %v394, %v392
    %v507 = vpack.c.b16 %v397, %v395
    %v508 = vpack.c.b16 %v398, %v396
    %v509 = vpack.c.b16 %v401, %v399
    %v510 = vpack.c.b16 %v402, %v400
    %v511 = vpack.c.b16 %v405, %v403
    %v512 = vpack.c.b16 %v406, %v404
    %v513 = vpack.c.b16 %v409, %v407
    %v514 = vpack.c.b16 %v410, %v408
    %v515 = vpack.c.b16 %v413, %v411
    %v516 = vpack.c.b16 %v414, %v412
    %v517 = vpack.c.b16 %v417, %v415
    %v518 = vpack.c.b16 %v418, %v416
    %v519 = vpack.c.b16 %v421, %v419
    %v520 = vpack.c.b16 %v422, %v420
    %v521 = vpack.c.b16 %v425, %v423
    %v522 = vpack.c.b16 %v426, %v424
    %v523 = vpack.c.b16 %v429, %v427
    %v524 = vpack.c.b16 %v430, %v428
    %v525 = vpack.c.b16 %v433, %v431
    %v526 = vpack.c.b16 %v434, %v432
    %v527 = vpack.c.b16 %v437, %v435
    %v528 = vpack.c.b16 %v438, %v436
    %v529 = vpack.c.b16 %v441, %v439
    %v530 = vpack.c.b16 %v442, %v440
    %v531 = vpack.c.b16 %v445, %v443
    %v532 = vpack.c.b16 %v446, %v444
    %v533 = vpack.c.b16 %v449, %v447
    %v534 = vpack.c.b16 %v450, %v448
    %v535 = vpack.c.b16 %v453, %v451
    %v536 = vpack.c.b16 %v454, %v452
    %v537 = vpack.c.b16 %v457, %v455
    %v538 = vpack.c.b16 %v458, %v456
    %v539 = vpack.c.b16 %v461, %v459
    %v540 = vpack.c.b16 %v462, %v460
    %v541 = vpack.c.b16 %v465, %v463
    %v542 = vpack.c.b16 %v466, %v464
    %v543 = vpack.c.b16 %v469, %v467
    %v544 = vpack.c.b16 %v470, %v468
    %v545 = vpack.c.b16 %v473, %v471
    %v546 = vpack.c.b16 %v474, %v472
    %v547 = vpack.c.b16 %v477, %v475
    %v548 = vpack.c.b16 %v478, %v476
    %v549 = vpack.c.b16 %v481, %v479
    %v550 = vpack.c.b16 %v482, %v480
    %v551 = vpack.c.b16 %v485, %v483
    %v552 = vpack.c.b16 %v486, %v484
    %v553 = vpack.c.b16 %v489, %v487
    %v554 = vpack.c.b16 %v490, %v488
    %619 = vmatprep.subr.bf16.mxu0 %v492
    %620 = vmatpush1.bf16.msra.mxu0 %v491
    %621 = vmatprep.subr.bf16.mxu0 %v494
    %622 = vmatpush1.bf16.msra.mxu0 %v493
    %623 = vmatprep.subr.bf16.mxu0 %v496
    %624 = vmatpush1.bf16.msra.mxu0 %v495
    %625 = vmatprep.subr.bf16.mxu0 %v498
    %626 = vmatpush1.bf16.msra.mxu0 %v497
    %627 = vmatprep.subr.bf16.mxu0 %v500
    %628 = vmatpush1.bf16.msra.mxu0 %v499
    %629 = vmatprep.subr.bf16.mxu0 %v502
    %630 = vmatpush1.bf16.msra.mxu0 %v501
    %631 = vmatprep.subr.bf16.mxu0 %v504
    %632 = vmatpush1.bf16.msra.mxu0 %v503
    %633 = vmatprep.subr.bf16.mxu0 %v506
    %634 = vmatpush1.bf16.msra.mxu0 %v505
    %635 = vmatprep.subr.bf16.mxu0 %v508
    %636 = vmatpush1.bf16.msra.mxu0 %v507
    %637 = vmatprep.subr.bf16.mxu0 %v510
    %638 = vmatpush1.bf16.msra.mxu0 %v509
    %639 = vmatprep.subr.bf16.mxu0 %v512
    %640 = vmatpush1.bf16.msra.mxu0 %v511
    %641 = vmatprep.subr.bf16.mxu0 %v514
    %642 = vmatpush1.bf16.msra.mxu0 %v513
    %643 = vmatprep.subr.bf16.mxu0 %v516
    %644 = vmatpush1.bf16.msra.mxu0 %v515
    %645 = vmatprep.subr.bf16.mxu0 %v518
    %646 = vmatpush1.bf16.msra.mxu0 %v517
    %647 = vmatprep.subr.bf16.mxu0 %v520
    %648 = vmatpush1.bf16.msra.mxu0 %v519
    %649 = vmatprep.subr.bf16.mxu0 %v522
    %650 = vmatpush1.bf16.msra.mxu0 %v521
    %651 = vmatprep.mubr.bf16.mxu0 %v220
    %652 = vmatmul.mubr.bf16.gmra.mrb[0].mxu0 %v219
    %v653 = vpop.f32.mrb[0].mxu0
    %v654 = vadd.f32 %v292, %v653
    %v655 = vpop.f32.mrb[0].mxu0
    %v656 = vadd.f32 %v296, %v655
    %v657 = vpop.f32.mrb[0].mxu0
    %v658 = vadd.f32 %v292, %v657
    %v659 = vpop.f32.mrb[0].mxu0
    %v660 = vadd.f32 %v296, %v659
    %661 = vdwg.mxu0
    %662 = vmatprep.subr.bf16.mxu0 %v524
    %663 = vmatpush1.bf16.msra.mxu0 %v523
    %664 = vmatprep.subr.bf16.mxu0 %v526
    %665 = vmatpush1.bf16.msra.mxu0 %v525
    %666 = vmatprep.subr.bf16.mxu0 %v528
    %667 = vmatpush1.bf16.msra.mxu0 %v527
    %668 = vmatprep.subr.bf16.mxu0 %v530
    %669 = vmatpush1.bf16.msra.mxu0 %v529
    %670 = vmatprep.subr.bf16.mxu0 %v532
    %671 = vmatpush1.bf16.msra.mxu0 %v531
    %672 = vmatprep.subr.bf16.mxu0 %v534
    %673 = vmatpush1.bf16.msra.mxu0 %v533
    %674 = vmatprep.subr.bf16.mxu0 %v536
    %675 = vmatpush1.bf16.msra.mxu0 %v535
    %676 = vmatprep.subr.bf16.mxu0 %v538
    %677 = vmatpush1.bf16.msra.mxu0 %v537
    %678 = vmatprep.subr.bf16.mxu0 %v540
    %679 = vmatpush1.bf16.msra.mxu0 %v539
    %680 = vmatprep.subr.bf16.mxu0 %v542
    %681 = vmatpush1.bf16.msra.mxu0 %v541
    %682 = vmatprep.subr.bf16.mxu0 %v544
    %683 = vmatpush1.bf16.msra.mxu0 %v543
    %684 = vmatprep.subr.bf16.mxu0 %v546
    %685 = vmatpush1.bf16.msra.mxu0 %v545
    %686 = vmatprep.subr.bf16.mxu0 %v548
    %687 = vmatpush1.bf16.msra.mxu0 %v547
    %688 = vmatprep.subr.bf16.mxu0 %v550
    %689 = vmatpush1.bf16.msra.mxu0 %v549
    %690 = vmatprep.subr.bf16.mxu0 %v552
    %691 = vmatpush1.bf16.msra.mxu0 %v551
    %692 = vmatprep.subr.bf16.mxu0 %v554
    %693 = vmatpush1.bf16.msra.mxu0 %v553
    %694 = vmatprep.mubr.bf16.mxu0 %v222
    %695 = vmatmul.mubr.bf16.gmra.mrb[0].mxu0 %v221
    %v696 = vpop.f32.mrb[0].mxu0
    %v697 = vadd.f32 %v654, %v696
    %v698 = vpop.f32.mrb[0].mxu0
    %v699 = vadd.f32 %v656, %v698
    %v700 = vpop.f32.mrb[0].mxu0
    %v701 = vadd.f32 %v658, %v700
    %v702 = vpop.f32.mrb[0].mxu0
    %v703 = vadd.f32 %v660, %v702
    %704 = vdwg.mxu0
    %v705 = vmax.f32 %v697, 0.0
    %v706 = vmax.f32 %v699, 0.0
    %v707 = vmax.f32 %v701, 0.0
    %v708 = vmax.f32 %v703, 0.0
    %v709 = vpack.c.bf16 %v707, %v705
    %v710 = vpack.c.bf16 %v708, %v706
    %v711 = vld [vmem:[#allocation7] sm:$0xf]
    %v712 = vld [vmem:[#allocation7 + $0x4] sm:$0xf]
    %v713 = vld [vmem:[#allocation7 + $0x8] sm:$0xf]
    %v714 = vld [vmem:[#allocation7 + $0xc] sm:$0xf]
    %v715 = vld [vmem:[#allocation7 + $0x10] sm:$0xf]
    %v716 = vld [vmem:[#allocation7 + $0x14] sm:$0xf]
    %v717 = vld [vmem:[#allocation7 + $0x18] sm:$0xf]
    %v718 = vld [vmem:[#allocation7 + $0x1c] sm:$0xf]
    %v719 = vld [vmem:[#allocation7 + $0x20] sm:$0xf]
    %v720 = vld [vmem:[#allocation7 + $0x24] sm:$0xf]
    %v721 = vld [vmem:[#allocation7 + $0x28] sm:$0xf]
    %v722 = vld [vmem:[#allocation7 + $0x2c] sm:$0xf]
    %v723 = vld [vmem:[#allocation7 + $0x30] sm:$0xf]
    %v724 = vld [vmem:[#allocation7 + $0x34] sm:$0xf]
    %v725 = vld [vmem:[#allocation7 + $0x38] sm:$0xf]
    %v726 = vld [vmem:[#allocation7 + $0x3c] sm:$0xf]
    %v727 = vld [vmem:[#allocation7 + $0x40] sm:$0xf]
    %v728 = vld [vmem:[#allocation7 + $0x44] sm:$0xf]
    %v729 = vld [vmem:[#allocation7 + $0x48] sm:$0xf]
    %v730 = vld [vmem:[#allocation7 + $0x4c] sm:$0xf]
    %v731 = vld [vmem:[#allocation7 + $0x50] sm:$0xf]
    %v732 = vld [vmem:[#allocation7 + $0x54] sm:$0xf]
    %v733 = vld [vmem:[#allocation7 + $0x58] sm:$0xf]
    %v734 = vld [vmem:[#allocation7 + $0x5c] sm:$0xf]
    %v735 = vld [vmem:[#allocation7 + $0x60] sm:$0xf]
    %v736 = vld [vmem:[#allocation7 + $0x64] sm:$0xf]
    %v737 = vld [vmem:[#allocation7 + $0x68] sm:$0xf]
    %v738 = vld [vmem:[#allocation7 + $0x6c] sm:$0xf]
    %v739 = vld [vmem:[#allocation7 + $0x70] sm:$0xf]
    %v740 = vld [vmem:[#allocation7 + $0x74] sm:$0xf]
    %v741 = vld [vmem:[#allocation7 + $0x78] sm:$0xf]
    %v742 = vld [vmem:[#allocation7 + $0x7c] sm:$0xf]
    %v743 = vld [vmem:[%s6] sm:$0x1]
    %v745 = vlaneseq
    %v746 = vshrl.u32 %v745, 7
    %v747 = vsub.s32 0, %v746
    %v748 = vrot.slane %v743, %v747
    %v782 = vunpack.c.l.b16 %v711
    %v783 = vunpack.c.l.b16 %v712
    %v784 = vunpack.c.l.b16 %v713
    %v785 = vunpack.c.l.b16 %v714
    %v786 = vunpack.c.l.b16 %v715
    %v787 = vunpack.c.l.b16 %v716
    %v788 = vunpack.c.l.b16 %v717
    %v789 = vunpack.c.l.b16 %v718
    %v790 = vunpack.c.l.b16 %v719
    %v791 = vunpack.c.l.b16 %v720
    %v792 = vunpack.c.l.b16 %v721
    %v793 = vunpack.c.l.b16 %v722
    %v794 = vunpack.c.l.b16 %v723
    %v795 = vunpack.c.l.b16 %v724
    %v796 = vunpack.c.l.b16 %v725
    %v797 = vunpack.c.l.b16 %v726
    %v798 = vunpack.c.l.b16 %v727
    %v799 = vunpack.c.l.b16 %v728
    %v800 = vunpack.c.l.b16 %v729
    %v801 = vunpack.c.l.b16 %v730
    %v802 = vunpack.c.l.b16 %v731
    %v803 = vunpack.c.l.b16 %v732
    %v804 = vunpack.c.l.b16 %v733
    %v805 = vunpack.c.l.b16 %v734
    %v806 = vunpack.c.l.b16 %v735
    %v807 = vunpack.c.l.b16 %v736
    %v808 = vunpack.c.l.b16 %v737
    %v809 = vunpack.c.l.b16 %v738
    %v810 = vunpack.c.l.b16 %v739
    %v811 = vunpack.c.l.b16 %v740
    %v812 = vunpack.c.l.b16 %v741
    %v813 = vunpack.c.l.b16 %v742
    %v814 = vpack.c.b16 %v783, %v782
    %v815 = vpack.c.b16 %v785, %v784
    %v816 = vpack.c.b16 %v787, %v786
    %v817 = vpack.c.b16 %v789, %v788
    %v818 = vpack.c.b16 %v791, %v790
    %v819 = vpack.c.b16 %v793, %v792
    %v820 = vpack.c.b16 %v795, %v794
    %v821 = vpack.c.b16 %v797, %v796
    %v822 = vpack.c.b16 %v799, %v798
    %v823 = vpack.c.b16 %v801, %v800
    %v824 = vpack.c.b16 %v803, %v802
    %v825 = vpack.c.b16 %v805, %v804
    %v826 = vpack.c.b16 %v807, %v806
    %v827 = vpack.c.b16 %v809, %v808
    %v828 = vpack.c.b16 %v811, %v810
    %v829 = vpack.c.b16 %v813, %v812
    %846 = vmatprep.subr.bf16.mxu0 0
    %847 = vmatpush1.bf16.msra.mxu0 %v814
    %848 = vmatprep.subr.bf16.mxu0 0
    %849 = vmatpush1.bf16.msra.mxu0 %v815
    %850 = vmatprep.subr.bf16.mxu0 0
    %851 = vmatpush1.bf16.msra.mxu0 %v816
    %852 = vmatprep.subr.bf16.mxu0 0
    %853 = vmatpush1.bf16.msra.mxu0 %v817
    %854 = vmatprep.subr.bf16.mxu0 0
    %855 = vmatpush1.bf16.msra.mxu0 %v818
    %856 = vmatprep.subr.bf16.mxu0 0
    %857 = vmatpush1.bf16.msra.mxu0 %v819
    %858 = vmatprep.subr.bf16.mxu0 0
    %859 = vmatpush1.bf16.msra.mxu0 %v820
    %860 = vmatprep.subr.bf16.mxu0 0
    %861 = vmatpush1.bf16.msra.mxu0 %v821
    %862 = vmatprep.subr.bf16.mxu0 0
    %863 = vmatpush1.bf16.msra.mxu0 %v822
    %864 = vmatprep.subr.bf16.mxu0 0
    %865 = vmatpush1.bf16.msra.mxu0 %v823
    %866 = vmatprep.subr.bf16.mxu0 0
    %867 = vmatpush1.bf16.msra.mxu0 %v824
    %868 = vmatprep.subr.bf16.mxu0 0
    %869 = vmatpush1.bf16.msra.mxu0 %v825
    %870 = vmatprep.subr.bf16.mxu0 0
    %871 = vmatpush1.bf16.msra.mxu0 %v826
    %872 = vmatprep.subr.bf16.mxu0 0
    %873 = vmatpush1.bf16.msra.mxu0 %v827
    %874 = vmatprep.subr.bf16.mxu0 0
    %875 = vmatpush1.bf16.msra.mxu0 %v828
    %876 = vmatprep.subr.bf16.mxu0 0
    %877 = vmatpush1.bf16.msra.mxu0 %v829
    %878 = vmatprep.mubr.bf16.mxu0 %v710
    %879 = vmatmul.mubr.bf16.gmra.mrb[0].mxu0 %v709
    %v880 = vpop.f32.mrb[0].mxu0
    %v881 = vadd.f32 %v748, %v880
    %v882 = vpop.f32.mrb[0].mxu0
    %v883 = vpop.f32.mrb[0].mxu0
    %v884 = vadd.f32 %v748, %v883
    %v885 = vpop.f32.mrb[0].mxu0
    %886 = vdwg.mxu0
    %v887 = vpack.c.bf16 %v884, %v881
    %v889 = vunpack.c.l.b16 %v887
    %v890 = vunpack.c.h.b16 %v887
    %v891 = vpack.c.b16 %v889, %v889
    %v892 = vpack.c.b16 %v890, %v890
    %895 = vst [vmem:[#allocation8] sm:$0xf] %v891
    %896 = vst [vmem:[#allocation8 + $0x4] sm:$0xf] %v892
    // Predicated region
    $region42: #{tpu_custom_call.1} parent=1 // pred_check
      _
    $region43: #{tpu_custom_call.1} parent=1 // pred_check_branch
      %898 = sbr.rel (0) target = $region45
    $region44: #{tpu_custom_call.1} parent=1 // pred_region
      %s900 = ssub.s32 128, 128
      %901 = vsyncadd [#allocation4], %s900
      %s902 = sshll.u32 [#allocation8], 4
      %s903 = int_to_ptr.vmem [resolvable:$true] %s902
      %908 = dma.vmem_to_hbm [thread:$0]  %s903, 128, %s7, [#allocation4], 64, 64, 4
    $region45: #{tpu_custom_call.1} parent=1 // pred_fallthru
      _
    // Predicated region
    $region46: #{tpu_custom_call.1} parent=1 // pred_check
      _
    $region47: #{tpu_custom_call.1} parent=1 // pred_check_branch
      %910 = sbr.rel (0) target = $region49
    $region48: #{tpu_custom_call.1} parent=1 // pred_region
      %911 = dma.done [#allocation4], 128
    $region49: #{tpu_custom_call.1} parent=1 // pred_fallthru
      _
    %912 = vsyncpa [#allocation3], 1
    %913 = vsyncpa [#allocation6], 1
    %914 = vsyncpa [#allocation4], 1

</llo_original>
